<compile_context>
chip_gen: v5e
topology: v5e:2x2
jax: 0.10.0
libtpu: 0.0.40
codegen_flags: <defaults>
</compile_context>

<pallas_src>
import jax
import jax.numpy as jnp
from jax.experimental import pallas as pl
from jax.experimental.pallas import tpu as pltpu

_LANE = 128          # vreg lane width / v5e MXU width
_MXU_WIDE = 256      # v6e / v7x MXU width
_SUBLANE_F32 = 8     # f32 sublane packing
_MAX_BATCH_TILE = 512


def _round_up(x, m):
    return (x + m - 1) // m * m


def merge_network_kernel(a_ref, b_ref, w2a_ref, w2b_ref, b2_ref, wo_ref, bo_ref, out_ref):
    # bf16 cast happens in-kernel on otherwise idle VPU slots; only f32 inputs cross HBM.
    a = a_ref[...].astype(jnp.bfloat16)                              # (tm, in)
    b = b_ref[...].astype(jnp.bfloat16)                              # (tm, in)
    # merge_layer2: Linear(cat(A,B)) + ReLU with the concat folded into split-K matmuls:
    #   cat(a,b) @ W2 == a @ W2[:in] + b @ W2[in:]
    h = jnp.dot(a, w2a_ref[...], preferred_element_type=jnp.float32)
    h = h + jnp.dot(b, w2b_ref[...], preferred_element_type=jnp.float32)
    h = jnp.maximum(h + b2_ref[...], 0.0)                            # (tm, h2p) f32
    # output_layer: Linear (padded hidden rows of Wo are zero -> contribute nothing).
    o = jnp.dot(h.astype(jnp.bfloat16), wo_ref[...],
                preferred_element_type=jnp.float32)                  # (tm, out_size) f32
    out_ref[...] = (o + bo_ref[...]).astype(out_ref.dtype)


def pack_params(params):
    """One-time packing: split W2 along its input axis (folds torch.cat into two dots),
    cast weights to bf16, pad the hidden width to a lane/MXU multiple.

    Invariant: padded hidden columns have zero W2 weights AND zero b2 bias, and the
    matching Wo rows are zero, so padding never changes the numerical result."""
    w2, b2, wo, bo = params["w2"], params["b2"], params["wo"], params["bo"]
    two_in, two_hid = w2.shape
    in_size = two_in // 2
    out_size = wo.shape[1]
    # 256-wide padding once the true hidden width is >= 128 (v6e/v7x MXU is 2x256^2);
    # 128-lane padding below that (already matches v5e's 128x128 MXU).
    mult = _MXU_WIDE if two_hid >= _LANE else _LANE
    h2p = _round_up(two_hid, mult)

    w2a = jnp.zeros((in_size, h2p), jnp.bfloat16).at[:, :two_hid].set(
        w2[:in_size].astype(jnp.bfloat16))
    w2b = jnp.zeros((in_size, h2p), jnp.bfloat16).at[:, :two_hid].set(
        w2[in_size:].astype(jnp.bfloat16))
    b2p = jnp.zeros((1, h2p), jnp.float32).at[:, :two_hid].set(b2.astype(jnp.float32))
    # Output width stays un-padded (out_size << 128): one masked store per tile is far
    # cheaper than a 16x-padded f32 writeback plus an extra wrapper slice pass.
    wop = jnp.zeros((h2p, out_size), jnp.bfloat16).at[:two_hid, :].set(wo.astype(jnp.bfloat16))
    bop = bo.astype(jnp.float32).reshape(1, out_size)
    return {"w2a": w2a, "w2b": w2b, "b2": b2p, "wo": wop, "bo": bop}


def _forward_impl(input_a, input_b, packed, single_buffer_weights=True):
    batch, in_size = input_a.shape
    w2a, w2b, b2, wo, bo = (packed["w2a"], packed["w2b"], packed["b2"],
                            packed["wo"], packed["bo"])
    h2p = w2a.shape[1]
    out_size = wo.shape[1]

    # Batch tile: multiple of 8 (f32 sublanes); split into >=2 tiles when batch permits
    # so both v7x TensorCores get work; capped so streamed tiles stay tiny vs VMEM.
    tm = min(_MAX_BATCH_TILE,
             max(_SUBLANE_F32, _round_up(pl.cdiv(batch, 2), _SUBLANE_F32)))
    grid_m = pl.cdiv(batch, tm)   # partial last block handled by Pallas (clipped writeback)

    # VMEM budget from actual buffer sizes: resident weights (single-buffered),
    # double-buffered streaming A/B/out tiles, plus in-kernel intermediates.
    resident_bytes = (2 * in_size * h2p * 2    # w2a + w2b (bf16)
                      + h2p * 4                # b2 (f32)
                      + h2p * out_size * 2     # wo (bf16)
                      + out_size * 4)          # bo (f32)
    streamed_bytes = 2 * (2 * tm * in_size * 4 + tm * out_size * 4)
    scratch_bytes = tm * h2p * (4 + 2) + 2 * tm * in_size * 2   # f32 h + bf16 copies
    # Clamp to [16 MiB default, 64 MiB] so the request is valid on v5e/v6e (128 MiB
    # physical) and v7x (64 MiB per-TC).
    vmem_limit = int(min(64 << 20,
                         max(16 << 20,
                             2 * (resident_bytes + streamed_bytes + scratch_bytes) + (4 << 20))))

    flops = 2 * batch * (2 * in_size) * h2p + 2 * batch * h2p * out_size
    bytes_accessed = 2 * batch * in_size * 4 + resident_bytes + batch * out_size * 4

    weight_kwargs = dict(pipeline_mode=pl.Buffered(1)) if single_buffer_weights else {}

    def resident(shape):
        # Constant index_map -> fetched once, stays resident across batch tiles.
        return pl.BlockSpec(shape, lambda i: (0, 0), **weight_kwargs)

    return pl.pallas_call(
        merge_network_kernel,
        out_shape=jax.ShapeDtypeStruct((batch, out_size), input_a.dtype),
        grid_spec=pltpu.PrefetchScalarGridSpec(
            num_scalar_prefetch=0,
            grid=(grid_m,),
            in_specs=[
                pl.BlockSpec((tm, in_size), lambda i: (i, 0)),   # A tile (streams)
                pl.BlockSpec((tm, in_size), lambda i: (i, 0)),   # B tile (streams)
                resident((in_size, h2p)),                        # W2[:in]   (resident)
                resident((in_size, h2p)),                        # W2[in:]   (resident)
                resident((1, h2p)),                              # b2        (resident)
                resident((h2p, out_size)),                       # Wo        (resident)
                resident((1, out_size)),                         # bo        (resident)
            ],
            out_specs=pl.BlockSpec((tm, out_size), lambda i: (i, 0)),
        ),
        compiler_params=pltpu.CompilerParams(
            dimension_semantics=("parallel",),
            vmem_limit_bytes=vmem_limit),
        cost_estimate=pl.CostEstimate(flops=flops, transcendentals=0,
                                      bytes_accessed=bytes_accessed),
    )(input_a, input_b, w2a, w2b, b2, wo, bo)


def merge_network_forward(input_a, input_b, packed):
    """packed: output of pack_params."""
    try:
        return _forward_impl(input_a, input_b, packed, single_buffer_weights=True)
    except Exception:
        # Fallback if this JAX build rejects buffer_count=1 on the main pipeline;
        # identical semantics, default double-buffered weights.
        return _forward_impl(input_a, input_b, packed, single_buffer_weights=False)


def init_params(key, input_size, hidden_size, output_size, dtype=jnp.float32):
    """Deterministic PyTorch-Linear-style init (uniform +-1/sqrt(fan_in)); weights stored
    as (in_features, out_features) == PyTorch weight transposed."""
    k1, k2, k3, k4 = jax.random.split(key, 4)
    fan2 = 2 * input_size
    fano = 2 * hidden_size
    bnd2 = 1.0 / jnp.sqrt(fan2)
    bndo = 1.0 / jnp.sqrt(fano)
    w2 = jax.random.uniform(k1, (2 * input_size, 2 * hidden_size), dtype, -bnd2, bnd2)
    b2 = jax.random.uniform(k2, (1, 2 * hidden_size), dtype, -bnd2, bnd2)
    wo = jax.random.uniform(k3, (2 * hidden_size, output_size), dtype, -bndo, bndo)
    bo = jax.random.uniform(k4, (1, output_size), dtype, -bndo, bndo)
    return {"w2": w2, "b2": b2, "wo": wo, "bo": bo}


def reference_forward(input_a, input_b, params):
    x = jnp.concatenate([input_a, input_b], axis=1)
    h = jnp.maximum(x @ params["w2"] + params["b2"], 0.0)
    return h @ params["wo"] + params["bo"]


if __name__ == "__main__":
    batch, input_size, hidden_size, output_size = 8, 16, 32, 8

    key = jax.random.PRNGKey(0)
    k_a, k_b, k_p = jax.random.split(key, 3)
    input_a = jax.random.normal(k_a, (batch, input_size), jnp.float32)
    input_b = jax.random.normal(k_b, (batch, input_size), jnp.float32)
    params = init_params(k_p, input_size, hidden_size, output_size)
    packed = pack_params(params)   # one-time: split W2, bf16 cast, lane/MXU padding

    out = merge_network_forward(input_a, input_b, packed)
    out = jax.block_until_ready(out)

    ref = reference_forward(input_a, input_b, params)  # f32 reference
    assert out.shape == (batch, output_size)
    # bf16 MXU operands (f32 accumulation) -> relaxed tolerance vs f32 reference.
    assert jnp.allclose(out, ref, atol=5e-2, rtol=5e-2)

    print("KERNEL_OK")
</pallas_src>

<mosaic_0001>
module attributes {stable_mosaic.version = 11 : i64} {
  func.func @merge_network_kernel(%arg0: i32, %arg1: memref<8x16xf32, #tpu.memory_space<vmem>>, %arg2: memref<8x16xf32, #tpu.memory_space<vmem>>, %arg3: memref<16x128xbf16, #tpu.memory_space<vmem>>, %arg4: memref<16x128xbf16, #tpu.memory_space<vmem>>, %arg5: memref<1x128xf32, #tpu.memory_space<vmem>>, %arg6: memref<128x8xbf16, #tpu.memory_space<vmem>>, %arg7: memref<1x8xf32, #tpu.memory_space<vmem>>, %arg8: memref<8x8xf32, #tpu.memory_space<vmem>>) attributes {dimension_semantics = [#tpu.dimension_semantics<parallel>], iteration_bounds = array<i64: 1>, scalar_prefetch = 0 : i64, scratch_operands = 0 : i64, tpu.core_type = #tpu.core_type<tc>, window_params = [{transform_indices = @transform_0, window_bounds = array<i64: 8, 16>}, {transform_indices = @transform_1, window_bounds = array<i64: 8, 16>}, {pipeline_mode = #tpu.pipeline_mode<synchronous>, transform_indices = @transform_2, window_bounds = array<i64: 16, 128>}, {pipeline_mode = #tpu.pipeline_mode<synchronous>, transform_indices = @transform_3, window_bounds = array<i64: 16, 128>}, {pipeline_mode = #tpu.pipeline_mode<synchronous>, transform_indices = @transform_4, window_bounds = array<i64: 1, 128>}, {pipeline_mode = #tpu.pipeline_mode<synchronous>, transform_indices = @transform_5, window_bounds = array<i64: 128, 8>}, {pipeline_mode = #tpu.pipeline_mode<synchronous>, transform_indices = @transform_6, window_bounds = array<i64: 1, 8>}, {transform_indices = @transform_7, window_bounds = array<i64: 8, 8>}]} {
    %c0 = arith.constant 0 : index
    %c0_0 = arith.constant 0 : index
    %0 = vector.load %arg1[%c0, %c0_0] : memref<8x16xf32, #tpu.memory_space<vmem>>, vector<8x16xf32>
    %1 = arith.truncf %0 : vector<8x16xf32> to vector<8x16xbf16>
    %c0_1 = arith.constant 0 : index
    %c0_2 = arith.constant 0 : index
    %2 = vector.load %arg2[%c0_1, %c0_2] : memref<8x16xf32, #tpu.memory_space<vmem>>, vector<8x16xf32>
    %3 = arith.truncf %2 : vector<8x16xf32> to vector<8x16xbf16>
    %c0_3 = arith.constant 0 : index
    %c0_4 = arith.constant 0 : index
    %4 = vector.load %arg3[%c0_3, %c0_4] : memref<16x128xbf16, #tpu.memory_space<vmem>>, vector<16x128xbf16>
    %cst = arith.constant dense<0.000000e+00> : vector<8x128xf32>
    %5 = tpu.matmul %1, %4, %cst {dimension_numbers = #tpu.dot_dimension_numbers<[1], [0], [0], [1], [0, 0, 1, 1], [], []>} : vector<8x16xbf16>, vector<16x128xbf16>, vector<8x128xf32> -> vector<8x128xf32>
    %c0_5 = arith.constant 0 : index
    %c0_6 = arith.constant 0 : index
    %6 = vector.load %arg4[%c0_5, %c0_6] : memref<16x128xbf16, #tpu.memory_space<vmem>>, vector<16x128xbf16>
    %cst_7 = arith.constant dense<0.000000e+00> : vector<8x128xf32>
    %7 = tpu.matmul %3, %6, %cst_7 {dimension_numbers = #tpu.dot_dimension_numbers<[1], [0], [0], [1], [0, 0, 1, 1], [], []>} : vector<8x16xbf16>, vector<16x128xbf16>, vector<8x128xf32> -> vector<8x128xf32>
    %8 = arith.addf %5, %7 : vector<8x128xf32>
    %c0_8 = arith.constant 0 : index
    %c0_9 = arith.constant 0 : index
    %9 = vector.load %arg5[%c0_8, %c0_9] : memref<1x128xf32, #tpu.memory_space<vmem>>, vector<1x128xf32>
    %10 = vector.broadcast %9 : vector<1x128xf32> to vector<8x128xf32>
    %11 = arith.addf %8, %10 : vector<8x128xf32>
    %cst_10 = arith.constant 0.000000e+00 : f32
    %12 = vector.broadcast %cst_10 : f32 to vector<8x128xf32>
    %13 = arith.maximumf %11, %12 : vector<8x128xf32>
    %14 = arith.truncf %13 : vector<8x128xf32> to vector<8x128xbf16>
    %c0_11 = arith.constant 0 : index
    %c0_12 = arith.constant 0 : index
    %15 = vector.load %arg6[%c0_11, %c0_12] : memref<128x8xbf16, #tpu.memory_space<vmem>>, vector<128x8xbf16>
    %cst_13 = arith.constant dense<0.000000e+00> : vector<8x8xf32>
    %16 = tpu.matmul %14, %15, %cst_13 {dimension_numbers = #tpu.dot_dimension_numbers<[1], [0], [0], [1], [0, 0, 1, 1], [], []>} : vector<8x128xbf16>, vector<128x8xbf16>, vector<8x8xf32> -> vector<8x8xf32>
    %c0_14 = arith.constant 0 : index
    %c0_15 = arith.constant 0 : index
    %17 = vector.load %arg7[%c0_14, %c0_15] : memref<1x8xf32, #tpu.memory_space<vmem>>, vector<1x8xf32>
    %18 = vector.broadcast %17 : vector<1x8xf32> to vector<8x8xf32>
    %19 = arith.addf %16, %18 : vector<8x8xf32>
    %c0_16 = arith.constant 0 : index
    %c0_17 = arith.constant 0 : index
    %20 = vector.load %arg8[%c0_16, %c0_17] : memref<8x8xf32, #tpu.memory_space<vmem>>, vector<8x8xf32>
    tpu.vector_store %arg8[%c0_16, %c0_17], %19 {strides = array<i32>} : memref<8x8xf32, #tpu.memory_space<vmem>>, vector<8x8xf32>,
    return
  }
  func.func @transform_0(%arg0: i32) -> (i32, i32) {
    %c0_i32 = arith.constant 0 : i32
    %c0_i32_0 = arith.constant 0 : i32
    return %arg0, %c0_i32 : i32, i32
  }
  func.func @transform_1(%arg0: i32) -> (i32, i32) {
    %c0_i32 = arith.constant 0 : i32
    %c0_i32_0 = arith.constant 0 : i32
    return %arg0, %c0_i32 : i32, i32
  }
  func.func @transform_2(%arg0: i32) -> (i32, i32) {
    %c0_i32 = arith.constant 0 : i32
    %c0_i32_0 = arith.constant 0 : i32
    %c0_i32_1 = arith.constant 0 : i32
    return %c0_i32, %c0_i32_0 : i32, i32
  }
  func.func @transform_3(%arg0: i32) -> (i32, i32) {
    %c0_i32 = arith.constant 0 : i32
    %c0_i32_0 = arith.constant 0 : i32
    %c0_i32_1 = arith.constant 0 : i32
    return %c0_i32, %c0_i32_0 : i32, i32
  }
  func.func @transform_4(%arg0: i32) -> (i32, i32) {
    %c0_i32 = arith.constant 0 : i32
    %c0_i32_0 = arith.constant 0 : i32
    %c0_i32_1 = arith.constant 0 : i32
    return %c0_i32, %c0_i32_0 : i32, i32
  }
  func.func @transform_5(%arg0: i32) -> (i32, i32) {
    %c0_i32 = arith.constant 0 : i32
    %c0_i32_0 = arith.constant 0 : i32
    %c0_i32_1 = arith.constant 0 : i32
    return %c0_i32, %c0_i32_0 : i32, i32
  }
  func.func @transform_6(%arg0: i32) -> (i32, i32) {
    %c0_i32 = arith.constant 0 : i32
    %c0_i32_0 = arith.constant 0 : i32
    %c0_i32_1 = arith.constant 0 : i32
    return %c0_i32, %c0_i32_0 : i32, i32
  }
  func.func @transform_7(%arg0: i32) -> (i32, i32) {
    %c0_i32 = arith.constant 0 : i32
    %c0_i32_0 = arith.constant 0 : i32
    return %arg0, %c0_i32 : i32, i32
  }
}

module attributes {stable_mosaic.version = 11 : i64} {
  func.func @merge_network_kernel(%arg0: i32, %arg1: memref<8x16xf32, #tpu.memory_space<vmem>>, %arg2: memref<8x16xf32, #tpu.memory_space<vmem>>, %arg3: memref<16x128xbf16, #tpu.memory_space<vmem>>, %arg4: memref<16x128xbf16, #tpu.memory_space<vmem>>, %arg5: memref<1x128xf32, #tpu.memory_space<vmem>>, %arg6: memref<128x8xbf16, #tpu.memory_space<vmem>>, %arg7: memref<1x8xf32, #tpu.memory_space<vmem>>, %arg8: memref<8x8xf32, #tpu.memory_space<vmem>>) attributes {dimension_semantics = [#tpu.dimension_semantics<parallel>], iteration_bounds = array<i64: 1>, scalar_prefetch = 0 : i64, scratch_operands = 0 : i64, tpu.core_type = #tpu.core_type<tc>, window_params = [{transform_indices = @transform_0, window_bounds = array<i64: 8, 16>}, {transform_indices = @transform_1, window_bounds = array<i64: 8, 16>}, {pipeline_mode = #tpu.pipeline_mode<synchronous>, transform_indices = @transform_2, window_bounds = array<i64: 16, 128>}, {pipeline_mode = #tpu.pipeline_mode<synchronous>, transform_indices = @transform_3, window_bounds = array<i64: 16, 128>}, {pipeline_mode = #tpu.pipeline_mode<synchronous>, transform_indices = @transform_4, window_bounds = array<i64: 1, 128>}, {pipeline_mode = #tpu.pipeline_mode<synchronous>, transform_indices = @transform_5, window_bounds = array<i64: 128, 8>}, {pipeline_mode = #tpu.pipeline_mode<synchronous>, transform_indices = @transform_6, window_bounds = array<i64: 1, 8>}, {transform_indices = @transform_7, window_bounds = array<i64: 8, 8>}]} {
    %c0 = arith.constant 0 : index
    %c0_0 = arith.constant 0 : index
    %0 = vector.load %arg1[%c0, %c0_0] : memref<8x16xf32, #tpu.memory_space<vmem>>, vector<8x16xf32>
    %1 = arith.truncf %0 : vector<8x16xf32> to vector<8x16xbf16>
    %c0_1 = arith.constant 0 : index
    %c0_2 = arith.constant 0 : index
    %2 = vector.load %arg2[%c0_1, %c0_2] : memref<8x16xf32, #tpu.memory_space<vmem>>, vector<8x16xf32>
    %3 = arith.truncf %2 : vector<8x16xf32> to vector<8x16xbf16>
    %c0_3 = arith.constant 0 : index
    %c0_4 = arith.constant 0 : index
    %4 = vector.load %arg3[%c0_3, %c0_4] : memref<16x128xbf16, #tpu.memory_space<vmem>>, vector<16x128xbf16>
    %cst = arith.constant dense<0.000000e+00> : vector<8x128xf32>
    %5 = tpu.matmul %1, %4, %cst {dimension_numbers = #tpu.dot_dimension_numbers<[1], [0], [0], [1], [0, 0, 1, 1], [], []>} : vector<8x16xbf16>, vector<16x128xbf16>, vector<8x128xf32> -> vector<8x128xf32>
    %c0_5 = arith.constant 0 : index
    %c0_6 = arith.constant 0 : index
    %6 = vector.load %arg4[%c0_5, %c0_6] : memref<16x128xbf16, #tpu.memory_space<vmem>>, vector<16x128xbf16>
    %cst_7 = arith.constant dense<0.000000e+00> : vector<8x128xf32>
    %7 = tpu.matmul %3, %6, %cst_7 {dimension_numbers = #tpu.dot_dimension_numbers<[1], [0], [0], [1], [0, 0, 1, 1], [], []>} : vector<8x16xbf16>, vector<16x128xbf16>, vector<8x128xf32> -> vector<8x128xf32>
    %8 = arith.addf %5, %7 : vector<8x128xf32>
    %c0_8 = arith.constant 0 : index
    %c0_9 = arith.constant 0 : index
    %9 = vector.load %arg5[%c0_8, %c0_9] : memref<1x128xf32, #tpu.memory_space<vmem>>, vector<1x128xf32>
    %10 = vector.broadcast %9 : vector<1x128xf32> to vector<8x128xf32>
    %11 = arith.addf %8, %10 : vector<8x128xf32>
    %cst_10 = arith.constant 0.000000e+00 : f32
    %12 = vector.broadcast %cst_10 : f32 to vector<8x128xf32>
    %13 = arith.maximumf %11, %12 : vector<8x128xf32>
    %14 = arith.truncf %13 : vector<8x128xf32> to vector<8x128xbf16>
    %c0_11 = arith.constant 0 : index
    %c0_12 = arith.constant 0 : index
    %15 = vector.load %arg6[%c0_11, %c0_12] : memref<128x8xbf16, #tpu.memory_space<vmem>>, vector<128x8xbf16>
    %cst_13 = arith.constant dense<0.000000e+00> : vector<8x8xf32>
    %16 = tpu.matmul %14, %15, %cst_13 {dimension_numbers = #tpu.dot_dimension_numbers<[1], [0], [0], [1], [0, 0, 1, 1], [], []>} : vector<8x128xbf16>, vector<128x8xbf16>, vector<8x8xf32> -> vector<8x8xf32>
    %c0_14 = arith.constant 0 : index
    %c0_15 = arith.constant 0 : index
    %17 = vector.load %arg7[%c0_14, %c0_15] : memref<1x8xf32, #tpu.memory_space<vmem>>, vector<1x8xf32>
    %18 = vector.broadcast %17 : vector<1x8xf32> to vector<8x8xf32>
    %19 = arith.addf %16, %18 : vector<8x8xf32>
    %c0_16 = arith.constant 0 : index
    %c0_17 = arith.constant 0 : index
    %20 = vector.load %arg8[%c0_16, %c0_17] : memref<8x8xf32, #tpu.memory_space<vmem>>, vector<8x8xf32>
    tpu.vector_store %arg8[%c0_16, %c0_17], %19 {strides = array<i32>} : memref<8x8xf32, #tpu.memory_space<vmem>>, vector<8x8xf32>,
    return
  }
  func.func @transform_0(%arg0: i32) -> (i32, i32) {
    %c0_i32 = arith.constant 0 : i32
    %c0_i32_0 = arith.constant 0 : i32
    return %arg0, %c0_i32 : i32, i32
  }
  func.func @transform_1(%arg0: i32) -> (i32, i32) {
    %c0_i32 = arith.constant 0 : i32
    %c0_i32_0 = arith.constant 0 : i32
    return %arg0, %c0_i32 : i32, i32
  }
  func.func @transform_2(%arg0: i32) -> (i32, i32) {
    %c0_i32 = arith.constant 0 : i32
    %c0_i32_0 = arith.constant 0 : i32
    %c0_i32_1 = arith.constant 0 : i32
    return %c0_i32, %c0_i32_0 : i32, i32
  }
  func.func @transform_3(%arg0: i32) -> (i32, i32) {
    %c0_i32 = arith.constant 0 : i32
    %c0_i32_0 = arith.constant 0 : i32
    %c0_i32_1 = arith.constant 0 : i32
    return %c0_i32, %c0_i32_0 : i32, i32
  }
  func.func @transform_4(%arg0: i32) -> (i32, i32) {
    %c0_i32 = arith.constant 0 : i32
    %c0_i32_0 = arith.constant 0 : i32
    %c0_i32_1 = arith.constant 0 : i32
    return %c0_i32, %c0_i32_0 : i32, i32
  }
  func.func @transform_5(%arg0: i32) -> (i32, i32) {
    %c0_i32 = arith.constant 0 : i32
    %c0_i32_0 = arith.constant 0 : i32
    %c0_i32_1 = arith.constant 0 : i32
    return %c0_i32, %c0_i32_0 : i32, i32
  }
  func.func @transform_6(%arg0: i32) -> (i32, i32) {
    %c0_i32 = arith.constant 0 : i32
    %c0_i32_0 = arith.constant 0 : i32
    %c0_i32_1 = arith.constant 0 : i32
    return %c0_i32, %c0_i32_0 : i32, i32
  }
  func.func @transform_7(%arg0: i32) -> (i32, i32) {
    %c0_i32 = arith.constant 0 : i32
    %c0_i32_0 = arith.constant 0 : i32
    return %arg0, %c0_i32 : i32, i32
  }
}

</mosaic_0001>

<llo_original>
// kernel: tpu_custom_call.1
$region0: #{tpu_custom_call.1}
  #allocation0 [shape = 'u32[]', space=smem, size = 0x4, offset = 0x4, fixed_abs, tag = 'smem constant byte address 0x4 - core index']
  #allocation1 [shape = 'u32[72,128]{1,0:T(1,128)}', space=vmem, size = 0x9000, scoped, tag = 'internal scratch']
  %s0 = inlined_call_operand.vmem [shape: f32[8,16], index: 0, kind: input, shape index: {}]
  %s1 = inlined_call_operand.vmem [shape: f32[8,16], index: 1, kind: input, shape index: {}]
  %s2 = inlined_call_operand.vmem [shape: bf16[16,128], index: 2, kind: input, shape index: {}]
  %s3 = inlined_call_operand.vmem [shape: bf16[16,128], index: 3, kind: input, shape index: {}]
  %s4 = inlined_call_operand.vmem [shape: f32[1,128], index: 4, kind: input, shape index: {}]
  %s5 = inlined_call_operand.vmem [shape: bf16[128,8], index: 5, kind: input, shape index: {}]
  %s6 = inlined_call_operand.vmem [shape: f32[1,8], index: 6, kind: input, shape index: {}]
  %s7 = inlined_call_operand.hbm [shape: f32[8,8], index: 7, kind: output, shape index: {}]
  %s8 = sld [smem:[#allocation0]]
  $region38: #{tpu_custom_call.1} parent=0
    _
  %s10 = ssub.s32 1, %s8
  %s11 = scalar_select 0, %s10, %s8
  $region1: #{tpu_custom_call.1} parent=0
    #allocation2 [shape = 'u8[4096]{0}', space=vmem, size = 0x1000, scoped, tag = 'output window, operand 0, single buffered']
    #allocation3 [shape = 's32[1]{0}', space=sflag, size = 0x4, scoped, tag = 'scoped memory for tpu_custom_call.1']
    %12 = vsyncpa [#allocation3], 0
    // Predicated region
    $region2: #{tpu_custom_call.1} parent=1 // pred_check
      _
    $region3: #{tpu_custom_call.1} parent=1 // pred_check_branch
      %14 = sbr.rel (0) target = $region5
    $region4: #{tpu_custom_call.1} parent=1 // pred_region
      _
    $region5: #{tpu_custom_call.1} parent=1 // pred_fallthru
      _
    // Predicated region
    $region6: #{tpu_custom_call.1} parent=1 // pred_check
      _
    $region7: #{tpu_custom_call.1} parent=1 // pred_check_branch
      %16 = sbr.rel (0) target = $region9
    $region8: #{tpu_custom_call.1} parent=1 // pred_region
      _
    $region9: #{tpu_custom_call.1} parent=1 // pred_fallthru
      _
    // Predicated region
    $region10: #{tpu_custom_call.1} parent=1 // pred_check
      _
    $region11: #{tpu_custom_call.1} parent=1 // pred_check_branch
      %18 = sbr.rel (0) target = $region13
    $region12: #{tpu_custom_call.1} parent=1 // pred_region
      _
    $region13: #{tpu_custom_call.1} parent=1 // pred_fallthru
      _
    // Predicated region
    $region14: #{tpu_custom_call.1} parent=1 // pred_check
      _
    $region15: #{tpu_custom_call.1} parent=1 // pred_check_branch
      %20 = sbr.rel (0) target = $region17
    $region16: #{tpu_custom_call.1} parent=1 // pred_region
      _
    $region17: #{tpu_custom_call.1} parent=1 // pred_fallthru
      _
    // Predicated region
    $region18: #{tpu_custom_call.1} parent=1 // pred_check
      _
    $region19: #{tpu_custom_call.1} parent=1 // pred_check_branch
      %22 = sbr.rel (0) target = $region21
    $region20: #{tpu_custom_call.1} parent=1 // pred_region
      _
    $region21: #{tpu_custom_call.1} parent=1 // pred_fallthru
      _
    // Predicated region
    $region22: #{tpu_custom_call.1} parent=1 // pred_check
      _
    $region23: #{tpu_custom_call.1} parent=1 // pred_check_branch
      %24 = sbr.rel (0) target = $region25
    $region24: #{tpu_custom_call.1} parent=1 // pred_region
      _
    $region25: #{tpu_custom_call.1} parent=1 // pred_fallthru
      _
    // Predicated region
    $region26: #{tpu_custom_call.1} parent=1 // pred_check
      _
    $region27: #{tpu_custom_call.1} parent=1 // pred_check_branch
      %26 = sbr.rel (0) target = $region29
    $region28: #{tpu_custom_call.1} parent=1 // pred_region
      _
    $region29: #{tpu_custom_call.1} parent=1 // pred_fallthru
      _
    %v28 = vld [vmem:[%s0] sm:$0xff]
    %v29 = vpack.c.bf16 %v28, %v28
    %v30 = vld [vmem:[%s1] sm:$0xff]
    %v31 = vpack.c.bf16 %v30, %v30
    %v32 = vld [vmem:[%s2] sm:$0xf]
    %v33 = vld [vmem:[%s2 + $0x4] sm:$0xf]
    %v34 = vld [vmem:[%s3] sm:$0xf]
    %v35 = vld [vmem:[%s3 + $0x4] sm:$0xf]
    %v38 = vunpack.c.l.b16 %v34
    %v39 = vunpack.c.l.b16 %v35
    %v40 = vpack.c.b16 %v39, %v38
    %vm42 = vcmask 130048
    %v44 = vsel %vm42, %v31, 0
    %46 = vmatpush.bf16.msra.mxu0 0
    %47 = vmatpush.bf16.msra.mxu0 0
    %48 = vmatpush.bf16.msra.mxu0 0
    %49 = vmatpush.bf16.msra.mxu0 0
    %50 = vmatpush.bf16.msra.mxu0 0
    %51 = vmatpush.bf16.msra.mxu0 0
    %52 = vmatpush.bf16.msra.mxu0 0
    %53 = vmatpush.bf16.msra.mxu0 %v40
    %54 = vmatmul.bf16.gmra.mxu0 %v44
    %v55 = vpop.f32.mrf.mxu0
    %v56 = vadd.f32 0.0, %v55
    %v57 = vpop.f32.mrf.mxu0
    %58 = vdwg.mxu0
    %v61 = vunpack.c.l.b16 %v32
    %v62 = vunpack.c.l.b16 %v33
    %v63 = vpack.c.b16 %v62, %v61
    %v66 = vsel %vm42, %v29, 0
    %68 = vmatpush.bf16.msra.mxu0 0
    %69 = vmatpush.bf16.msra.mxu0 0
    %70 = vmatpush.bf16.msra.mxu0 0
    %71 = vmatpush.bf16.msra.mxu0 0
    %72 = vmatpush.bf16.msra.mxu0 0
    %73 = vmatpush.bf16.msra.mxu0 0
    %74 = vmatpush.bf16.msra.mxu0 0
    %75 = vmatpush.bf16.msra.mxu0 %v63
    %76 = vmatmul.bf16.gmra.mxu0 %v66
    %v77 = vpop.f32.mrf.mxu0
    %v78 = vadd.f32 %v56, %v77
    %v79 = vpop.f32.mrf.mxu0
    %80 = vdwg.mxu0
    %v81 = vld [vmem:[%s4] sm:$0x1]
    %v83 = vperm.slane %v81, 0
    %v85 = vadd.f32 %v78, %v83
    %v86 = vmax.f32 %v85, 0.0
    %v87 = vpack.c.bf16 %v86, %v86
    %v88 = vld [vmem:[%s5] sm:$0xf]
    %v89 = vld [vmem:[%s5 + $0x4] sm:$0xf]
    %v90 = vld [vmem:[%s5 + $0x8] sm:$0xf]
    %v91 = vld [vmem:[%s5 + $0xc] sm:$0xf]
    %v92 = vld [vmem:[%s5 + $0x10] sm:$0xf]
    %v93 = vld [vmem:[%s5 + $0x14] sm:$0xf]
    %v94 = vld [vmem:[%s5 + $0x18] sm:$0xf]
    %v95 = vld [vmem:[%s5 + $0x1c] sm:$0xf]
    %v96 = vld [vmem:[%s5 + $0x20] sm:$0xf]
    %v97 = vld [vmem:[%s5 + $0x24] sm:$0xf]
    %v98 = vld [vmem:[%s5 + $0x28] sm:$0xf]
    %v99 = vld [vmem:[%s5 + $0x2c] sm:$0xf]
    %v100 = vld [vmem:[%s5 + $0x30] sm:$0xf]
    %v101 = vld [vmem:[%s5 + $0x34] sm:$0xf]
    %v102 = vld [vmem:[%s5 + $0x38] sm:$0xf]
    %v103 = vld [vmem:[%s5 + $0x3c] sm:$0xf]
    %v104 = vld [vmem:[%s6] sm:$0x1]
    %v106 = vperm.slane %v104, 0
    %v124 = vunpack.c.l.b16 %v88
    %v125 = vunpack.c.l.b16 %v89
    %v126 = vunpack.c.l.b16 %v90
    %v127 = vunpack.c.l.b16 %v91
    %v128 = vunpack.c.l.b16 %v92
    %v129 = vunpack.c.l.b16 %v93
    %v130 = vunpack.c.l.b16 %v94
    %v131 = vunpack.c.l.b16 %v95
    %v132 = vunpack.c.l.b16 %v96
    %v133 = vunpack.c.l.b16 %v97
    %v134 = vunpack.c.l.b16 %v98
    %v135 = vunpack.c.l.b16 %v99
    %v136 = vunpack.c.l.b16 %v100
    %v137 = vunpack.c.l.b16 %v101
    %v138 = vunpack.c.l.b16 %v102
    %v139 = vunpack.c.l.b16 %v103
    %v140 = vpack.c.b16 %v125, %v124
    %v141 = vpack.c.b16 %v127, %v126
    %v142 = vpack.c.b16 %v129, %v128
    %v143 = vpack.c.b16 %v131, %v130
    %v144 = vpack.c.b16 %v133, %v132
    %v145 = vpack.c.b16 %v135, %v134
    %v146 = vpack.c.b16 %v137, %v136
    %v147 = vpack.c.b16 %v139, %v138
    %156 = vmatpush.bf16.msra.mxu0 %v147
    %157 = vmatpush.bf16.msra.mxu0 %v146
    %158 = vmatpush.bf16.msra.mxu0 %v145
    %159 = vmatpush.bf16.msra.mxu0 %v144
    %160 = vmatpush.bf16.msra.mxu0 %v143
    %161 = vmatpush.bf16.msra.mxu0 %v142
    %162 = vmatpush.bf16.msra.mxu0 %v141
    %163 = vmatpush.bf16.msra.mxu0 %v140
    %164 = vmatmul.bf16.gmra.mxu0 %v87
    %v165 = vpop.f32.mrf.mxu0
    %v166 = vadd.f32 %v106, %v165
    %v167 = vpop.f32.mrf.mxu0
    %168 = vdwg.mxu0
    %vm169 = vcmask 64512
    %170 = vst.msk [vmem:[#allocation2] sm:$0xff] %vm169, %v166
    // Predicated region
    $region30: #{tpu_custom_call.1} parent=1 // pred_check
      _
    $region31: #{tpu_custom_call.1} parent=1 // pred_check_branch
      %172 = sbr.rel (0) target = $region33
    $region32: #{tpu_custom_call.1} parent=1 // pred_region
      %174 = vsyncadd [#allocation3], 0
      %s176 = sshll.u32 [#allocation2], 4
      %s177 = int_to_ptr.vmem [resolvable:$true] %s176
      %s178 = sshll.u32 %s7, 4
      %s179 = int_to_ptr.hbm [resolvable:$true] %s178
      %181 = dma.vmem_to_hbm [thread:$0]  %s177, 128, %s179, [#allocation3]
    $region33: #{tpu_custom_call.1} parent=1 // pred_fallthru
      _
    // Predicated region
    $region34: #{tpu_custom_call.1} parent=1 // pred_check
      _
    $region35: #{tpu_custom_call.1} parent=1 // pred_check_branch
      %183 = sbr.rel (0) target = $region37
    $region36: #{tpu_custom_call.1} parent=1 // pred_region
      %185 = dma.done [#allocation3], 128
    $region37: #{tpu_custom_call.1} parent=1 // pred_fallthru
      _
    %186 = vsyncpa [#allocation3], 1

// kernel: tpu_custom_call.1
$region0: #{tpu_custom_call.1}
  #allocation0 [shape = 'u32[]', space=smem, size = 0x4, offset = 0x4, fixed_abs, tag = 'smem constant byte address 0x4 - core index']
  #allocation1 [shape = 'u32[72,128]{1,0:T(1,128)}', space=vmem, size = 0x9000, scoped, tag = 'internal scratch']
  %s0 = inlined_call_operand.vmem [shape: f32[8,16], index: 0, kind: input, shape index: {}]
  %s1 = inlined_call_operand.vmem [shape: f32[8,16], index: 1, kind: input, shape index: {}]
  %s2 = inlined_call_operand.vmem [shape: bf16[16,128], index: 2, kind: input, shape index: {}]
  %s3 = inlined_call_operand.vmem [shape: bf16[16,128], index: 3, kind: input, shape index: {}]
  %s4 = inlined_call_operand.vmem [shape: f32[1,128], index: 4, kind: input, shape index: {}]
  %s5 = inlined_call_operand.vmem [shape: bf16[128,8], index: 5, kind: input, shape index: {}]
  %s6 = inlined_call_operand.vmem [shape: f32[1,8], index: 6, kind: input, shape index: {}]
  %s7 = inlined_call_operand.hbm [shape: f32[8,8], index: 7, kind: output, shape index: {}]
  %s8 = sld [smem:[#allocation0]]
  $region38: #{tpu_custom_call.1} parent=0
    _
  %s10 = ssub.s32 1, %s8
  %s11 = scalar_select 0, %s10, %s8
  $region1: #{tpu_custom_call.1} parent=0
    #allocation2 [shape = 'u8[4096]{0}', space=vmem, size = 0x1000, scoped, tag = 'output window, operand 0, single buffered']
    #allocation3 [shape = 's32[1]{0}', space=sflag, size = 0x4, scoped, tag = 'scoped memory for tpu_custom_call.1']
    %12 = vsyncpa [#allocation3], 0
    // Predicated region
    $region2: #{tpu_custom_call.1} parent=1 // pred_check
      _
    $region3: #{tpu_custom_call.1} parent=1 // pred_check_branch
      %14 = sbr.rel (0) target = $region5
    $region4: #{tpu_custom_call.1} parent=1 // pred_region
      _
    $region5: #{tpu_custom_call.1} parent=1 // pred_fallthru
      _
    // Predicated region
    $region6: #{tpu_custom_call.1} parent=1 // pred_check
      _
    $region7: #{tpu_custom_call.1} parent=1 // pred_check_branch
      %16 = sbr.rel (0) target = $region9
    $region8: #{tpu_custom_call.1} parent=1 // pred_region
      _
    $region9: #{tpu_custom_call.1} parent=1 // pred_fallthru
      _
    // Predicated region
    $region10: #{tpu_custom_call.1} parent=1 // pred_check
      _
    $region11: #{tpu_custom_call.1} parent=1 // pred_check_branch
      %18 = sbr.rel (0) target = $region13
    $region12: #{tpu_custom_call.1} parent=1 // pred_region
      _
    $region13: #{tpu_custom_call.1} parent=1 // pred_fallthru
      _
    // Predicated region
    $region14: #{tpu_custom_call.1} parent=1 // pred_check
      _
    $region15: #{tpu_custom_call.1} parent=1 // pred_check_branch
      %20 = sbr.rel (0) target = $region17
    $region16: #{tpu_custom_call.1} parent=1 // pred_region
      _
    $region17: #{tpu_custom_call.1} parent=1 // pred_fallthru
      _
    // Predicated region
    $region18: #{tpu_custom_call.1} parent=1 // pred_check
      _
    $region19: #{tpu_custom_call.1} parent=1 // pred_check_branch
      %22 = sbr.rel (0) target = $region21
    $region20: #{tpu_custom_call.1} parent=1 // pred_region
      _
    $region21: #{tpu_custom_call.1} parent=1 // pred_fallthru
      _
    // Predicated region
    $region22: #{tpu_custom_call.1} parent=1 // pred_check
      _
    $region23: #{tpu_custom_call.1} parent=1 // pred_check_branch
      %24 = sbr.rel (0) target = $region25
    $region24: #{tpu_custom_call.1} parent=1 // pred_region
      _
    $region25: #{tpu_custom_call.1} parent=1 // pred_fallthru
      _
    // Predicated region
    $region26: #{tpu_custom_call.1} parent=1 // pred_check
      _
    $region27: #{tpu_custom_call.1} parent=1 // pred_check_branch
      %26 = sbr.rel (0) target = $region29
    $region28: #{tpu_custom_call.1} parent=1 // pred_region
      _
    $region29: #{tpu_custom_call.1} parent=1 // pred_fallthru
      _
    %v28 = vld [vmem:[%s0] sm:$0xff]
    %v29 = vpack.c.bf16 %v28, %v28
    %v30 = vld [vmem:[%s1] sm:$0xff]
    %v31 = vpack.c.bf16 %v30, %v30
    %v32 = vld [vmem:[%s2] sm:$0xf]
    %v33 = vld [vmem:[%s2 + $0x4] sm:$0xf]
    %v34 = vld [vmem:[%s3] sm:$0xf]
    %v35 = vld [vmem:[%s3 + $0x4] sm:$0xf]
    %v38 = vunpack.c.l.b16 %v34
    %v39 = vunpack.c.l.b16 %v35
    %v40 = vpack.c.b16 %v39, %v38
    %vm42 = vcmask 130048
    %v44 = vsel %vm42, %v31, 0
    %46 = vmatpush.bf16.msra.mxu0 0
    %47 = vmatpush.bf16.msra.mxu0 0
    %48 = vmatpush.bf16.msra.mxu0 0
    %49 = vmatpush.bf16.msra.mxu0 0
    %50 = vmatpush.bf16.msra.mxu0 0
    %51 = vmatpush.bf16.msra.mxu0 0
    %52 = vmatpush.bf16.msra.mxu0 0
    %53 = vmatpush.bf16.msra.mxu0 %v40
    %54 = vmatmul.bf16.gmra.mxu0 %v44
    %v55 = vpop.f32.mrf.mxu0
    %v56 = vadd.f32 0.0, %v55
    %v57 = vpop.f32.mrf.mxu0
    %58 = vdwg.mxu0
    %v61 = vunpack.c.l.b16 %v32
    %v62 = vunpack.c.l.b16 %v33
    %v63 = vpack.c.b16 %v62, %v61
    %v66 = vsel %vm42, %v29, 0
    %68 = vmatpush.bf16.msra.mxu0 0
    %69 = vmatpush.bf16.msra.mxu0 0
    %70 = vmatpush.bf16.msra.mxu0 0
    %71 = vmatpush.bf16.msra.mxu0 0
    %72 = vmatpush.bf16.msra.mxu0 0
    %73 = vmatpush.bf16.msra.mxu0 0
    %74 = vmatpush.bf16.msra.mxu0 0
    %75 = vmatpush.bf16.msra.mxu0 %v63
    %76 = vmatmul.bf16.gmra.mxu0 %v66
    %v77 = vpop.f32.mrf.mxu0
    %v78 = vadd.f32 %v56, %v77
    %v79 = vpop.f32.mrf.mxu0
    %80 = vdwg.mxu0
    %v81 = vld [vmem:[%s4] sm:$0x1]
    %v83 = vperm.slane %v81, 0
    %v85 = vadd.f32 %v78, %v83
    %v86 = vmax.f32 %v85, 0.0
    %v87 = vpack.c.bf16 %v86, %v86
    %v88 = vld [vmem:[%s5] sm:$0xf]
    %v89 = vld [vmem:[%s5 + $0x4] sm:$0xf]
    %v90 = vld [vmem:[%s5 + $0x8] sm:$0xf]
    %v91 = vld [vmem:[%s5 + $0xc] sm:$0xf]
    %v92 = vld [vmem:[%s5 + $0x10] sm:$0xf]
    %v93 = vld [vmem:[%s5 + $0x14] sm:$0xf]
    %v94 = vld [vmem:[%s5 + $0x18] sm:$0xf]
    %v95 = vld [vmem:[%s5 + $0x1c] sm:$0xf]
    %v96 = vld [vmem:[%s5 + $0x20] sm:$0xf]
    %v97 = vld [vmem:[%s5 + $0x24] sm:$0xf]
    %v98 = vld [vmem:[%s5 + $0x28] sm:$0xf]
    %v99 = vld [vmem:[%s5 + $0x2c] sm:$0xf]
    %v100 = vld [vmem:[%s5 + $0x30] sm:$0xf]
    %v101 = vld [vmem:[%s5 + $0x34] sm:$0xf]
    %v102 = vld [vmem:[%s5 + $0x38] sm:$0xf]
    %v103 = vld [vmem:[%s5 + $0x3c] sm:$0xf]
    %v104 = vld [vmem:[%s6] sm:$0x1]
    %v106 = vperm.slane %v104, 0
    %v124 = vunpack.c.l.b16 %v88
    %v125 = vunpack.c.l.b16 %v89
    %v126 = vunpack.c.l.b16 %v90
    %v127 = vunpack.c.l.b16 %v91
    %v128 = vunpack.c.l.b16 %v92
    %v129 = vunpack.c.l.b16 %v93
    %v130 = vunpack.c.l.b16 %v94
    %v131 = vunpack.c.l.b16 %v95
    %v132 = vunpack.c.l.b16 %v96
    %v133 = vunpack.c.l.b16 %v97
    %v134 = vunpack.c.l.b16 %v98
    %v135 = vunpack.c.l.b16 %v99
    %v136 = vunpack.c.l.b16 %v100
    %v137 = vunpack.c.l.b16 %v101
    %v138 = vunpack.c.l.b16 %v102
    %v139 = vunpack.c.l.b16 %v103
    %v140 = vpack.c.b16 %v125, %v124
    %v141 = vpack.c.b16 %v127, %v126
    %v142 = vpack.c.b16 %v129, %v128
    %v143 = vpack.c.b16 %v131, %v130
    %v144 = vpack.c.b16 %v133, %v132
    %v145 = vpack.c.b16 %v135, %v134
    %v146 = vpack.c.b16 %v137, %v136
    %v147 = vpack.c.b16 %v139, %v138
    %156 = vmatpush.bf16.msra.mxu0 %v147
    %157 = vmatpush.bf16.msra.mxu0 %v146
    %158 = vmatpush.bf16.msra.mxu0 %v145
    %159 = vmatpush.bf16.msra.mxu0 %v144
    %160 = vmatpush.bf16.msra.mxu0 %v143
    %161 = vmatpush.bf16.msra.mxu0 %v142
    %162 = vmatpush.bf16.msra.mxu0 %v141
    %163 = vmatpush.bf16.msra.mxu0 %v140
    %164 = vmatmul.bf16.gmra.mxu0 %v87
    %v165 = vpop.f32.mrf.mxu0
    %v166 = vadd.f32 %v106, %v165
    %v167 = vpop.f32.mrf.mxu0
    %168 = vdwg.mxu0
    %vm169 = vcmask 64512
    %170 = vst.msk [vmem:[#allocation2] sm:$0xff] %vm169, %v166
    // Predicated region
    $region30: #{tpu_custom_call.1} parent=1 // pred_check
      _
    $region31: #{tpu_custom_call.1} parent=1 // pred_check_branch
      %172 = sbr.rel (0) target = $region33
    $region32: #{tpu_custom_call.1} parent=1 // pred_region
      %174 = vsyncadd [#allocation3], 0
      %s176 = sshll.u32 [#allocation2], 4
      %s177 = int_to_ptr.vmem [resolvable:$true] %s176
      %s178 = sshll.u32 %s7, 4
      %s179 = int_to_ptr.hbm [resolvable:$true] %s178
      %181 = dma.vmem_to_hbm [thread:$0]  %s177, 128, %s179, [#allocation3]
    $region33: #{tpu_custom_call.1} parent=1 // pred_fallthru
      _
    // Predicated region
    $region34: #{tpu_custom_call.1} parent=1 // pred_check
      _
    $region35: #{tpu_custom_call.1} parent=1 // pred_check_branch
      %183 = sbr.rel (0) target = $region37
    $region36: #{tpu_custom_call.1} parent=1 // pred_region
      %185 = dma.done [#allocation3], 128
    $region37: #{tpu_custom_call.1} parent=1 // pred_fallthru
      _
    %186 = vsyncpa [#allocation3], 1

</llo_original>
